<compile_context>
chip_gen: v7x
topology: tpu7x:2x2x1
jax: 0.10.0
libtpu: 0.0.40
codegen_flags: <defaults>
</compile_context>

<pallas_src>
import functools

import jax
import jax.numpy as jnp
from jax.experimental import pallas as pl
from jax.experimental.pallas import tpu as pltpu


def _round_up(x, m):
    return ((x + m - 1) // m) * m


def _ce_with_mask_kernel(pred_ref, label_ref, loss_ref, acc_ref, *,
                         n_total, tm, tiles_per_core, need_mask):
    i = pl.program_id(1)

    # Zero the resident per-core accumulators on the first inner grid step.
    @pl.when(i == 0)
    def _():
        loss_ref[...] = jnp.zeros_like(loss_ref)
        acc_ref[...] = jnp.zeros_like(acc_ref)

    x = pred_ref[...]                       # (TM, C) input dtype (no eager upcast)
    lab = label_ref[...]                    # (TM, 1) int32
    rows, c = x.shape

    col = jax.lax.broadcasted_iota(jnp.int32, (rows, c), 1)
    onehot = col == lab                     # (TM, C) bool

    # Row max and true-class logit, both gathered in the input dtype.
    m = jnp.max(x, axis=-1, keepdims=True)                          # (TM, 1)
    true_x = jnp.sum(jnp.where(onehot, x, jnp.zeros_like(x)),
                     axis=-1, keepdims=True)                        # (TM, 1)

    # Numerically stable log-sum-exp; widen AT the subtraction so bf16/fp16
    # inputs don't lose mantissa bits before exp().
    m_f32 = m.astype(jnp.float32)
    z = x.astype(jnp.float32) - m_f32                               # (TM, C) f32
    lse = jnp.log(jnp.sum(jnp.exp(z), axis=-1, keepdims=True))      # (TM, 1) f32

    per_row_loss = lse - (true_x.astype(jnp.float32) - m_f32)       # (TM, 1) f32
    # Accuracy: label logit equals the row max.  (Exact ties between the label
    # logit and another maximum count as correct, unlike torch's first-index
    # argmax; only differs on exact float ties.)
    correct = true_x == m                                           # (TM, 1) bool

    if need_mask:
        tile = pl.program_id(0) * tiles_per_core + i
        row = jax.lax.broadcasted_iota(jnp.int32, (rows, 1), 0) + tile * tm
        valid = row < n_total
        # Keep these as selects (not multiplies) so NaN/Inf garbage from rows
        # past N cannot propagate into the sums.
        per_row_loss = jnp.where(valid, per_row_loss, 0.0)
        correct = jnp.logical_and(correct, valid)

    # Scalar partial sums broadcast across the 128-lane accumulator block.
    loss_ref[...] += jnp.sum(per_row_loss)
    acc_ref[...] += jnp.sum(correct.astype(jnp.float32))


def ce_with_mask(pred, label, *, block_rows=None):
    """pred: (N, C) float logits, label: (N,) int class indices.

    Returns (mean cross-entropy loss, accuracy) as f32 scalars, matching
    nn.CrossEntropyLoss(reduction='mean') and sum(argmax(pred,1)==label)/N.
    """
    n, c = pred.shape
    dtype = pred.dtype
    itemsize = jnp.dtype(dtype).itemsize

    label2d = label.astype(jnp.int32).reshape(n, 1)

    # Scoped-VMEM budget per generation (v5e/v6e: 128 MiB physical, v7x: 64 MiB).
    try:
        phys_vmem = int(pltpu.get_tpu_info().vmem_capacity_bytes)
    except Exception:
        phys_vmem = 64 * 1024 * 1024
    vmem_limit = int(min(48 * 1024 * 1024, (phys_vmem * 3) // 4))

    # Batch tile: sized against the double-buffered input block PLUS ~3 full
    # width f32/int32 temporaries (col/onehot, z, exp(z)) the body materializes.
    sublane = 8 if itemsize >= 4 else 16
    row_bytes = 2 * c * itemsize + 3 * c * 4
    if block_rows is None:
        budget = vmem_limit - 4 * 1024 * 1024       # headroom: label blocks + accumulators
        tm = budget // row_bytes
        tm = max(sublane, min(512, (tm // sublane) * sublane))
    else:
        tm = max(sublane, _round_up(block_rows, sublane))
    tm = min(tm, _round_up(n, sublane))

    n_tiles = pl.cdiv(n, tm)
    # Split batch tiles over TensorCores (v7x: 2 TCs; serialized on 1-TC chips).
    num_cores = 2 if n_tiles >= 2 else 1
    tiles_per_core = pl.cdiv(n_tiles, num_cores)
    need_mask = (n % tm != 0) or (num_cores * tiles_per_core != n_tiles)

    def in_map(p, i, _tpc=tiles_per_core, _nt=n_tiles):
        # Clamp so an entirely out-of-range tile (only possible when need_mask)
        # re-reads a valid tile; its rows are zeroed by the in-kernel mask.
        return (jnp.minimum(p * _tpc + i, _nt - 1), 0)

    def out_map(p, i):
        return (0, p)

    kernel = functools.partial(_ce_with_mask_kernel, n_total=n, tm=tm,
                               tiles_per_core=tiles_per_core, need_mask=need_mask)

    cost = pl.CostEstimate(
        flops=6 * n * c,
        transcendentals=n * c + n,
        bytes_accessed=n * c * itemsize + n * 4 + 2 * 128 * num_cores * 4,
    )

    loss_parts, acc_parts = pl.pallas_call(
        kernel,
        out_shape=(
            jax.ShapeDtypeStruct((1, 128 * num_cores), jnp.float32),
            jax.ShapeDtypeStruct((1, 128 * num_cores), jnp.float32),
        ),
        grid_spec=pltpu.PrefetchScalarGridSpec(
            num_scalar_prefetch=0,
            grid=(num_cores, tiles_per_core),
            in_specs=[
                # Class dim = full array extent -> no host-side pad needed;
                # Mosaic masks the tail lanes of the reductions.
                pl.BlockSpec((tm, c), in_map),
                pl.BlockSpec((tm, 1), in_map),
            ],
            out_specs=(
                pl.BlockSpec((1, 128), out_map),
                pl.BlockSpec((1, 128), out_map),
            ),
        ),
        compiler_params=pltpu.CompilerParams(
            dimension_semantics=("parallel", "arbitrary"),
            vmem_limit_bytes=vmem_limit,
        ),
        cost_estimate=cost,
    )(pred, label2d)

    # Each core's 128-lane block holds its partial sum replicated across lanes.
    loss = jnp.sum(loss_parts.reshape(num_cores, 128)[:, 0]) / n
    acc = jnp.sum(acc_parts.reshape(num_cores, 128)[:, 0]) / n
    # TODO(synk): for vocab-scale C (32k+ classes) add a second "arbitrary" grid
    # axis over the class dim with online-softmax running (max, sum-exp, true_x)
    # scratch so TM stays at 256-512 rows instead of collapsing.
    return loss, acc


if __name__ == "__main__":
    key = jax.random.PRNGKey(0)
    k1, k2, k3, k4, k5, k6 = jax.random.split(key, 6)

    # Test 1: single tile, no validity-mask path.
    N, C = 8, 32
    pred = jax.random.normal(k1, (N, C), dtype=jnp.float32)
    label = jax.random.randint(k2, (N,), 0, C, dtype=jnp.int32)
    loss, acc = ce_with_mask(pred, label)
    jax.block_until_ready((loss, acc))
    logp = jax.nn.log_softmax(pred, axis=-1)
    ref_loss = -jnp.mean(logp[jnp.arange(N), label])
    ref_acc = jnp.sum(jnp.argmax(pred, axis=1) == label) / N
    assert jnp.allclose(loss, ref_loss, atol=1e-5), (loss, ref_loss)
    assert jnp.allclose(acc, ref_acc, atol=1e-6), (acc, ref_acc)

    # Test 2: multi-tile grid, ragged last tile, 2-way parallel split with one
    # fully out-of-range tile (exercises accumulators + row-validity mask).
    N2, C2 = 20, 32
    pred2 = jax.random.normal(k3, (N2, C2), dtype=jnp.float32)
    label2 = jax.random.randint(k4, (N2,), 0, C2, dtype=jnp.int32)
    loss2, acc2 = ce_with_mask(pred2, label2, block_rows=8)
    jax.block_until_ready((loss2, acc2))
    logp2 = jax.nn.log_softmax(pred2, axis=-1)
    ref_loss2 = -jnp.mean(logp2[jnp.arange(N2), label2])
    ref_acc2 = jnp.sum(jnp.argmax(pred2, axis=1) == label2) / N2
    assert jnp.allclose(loss2, ref_loss2, atol=1e-5), (loss2, ref_loss2)
    assert jnp.allclose(acc2, ref_acc2, atol=1e-6), (acc2, ref_acc2)

    # Test 3: bf16 logits with C not a multiple of 128 (exercises the unpadded
    # full-extent class block and the input-dtype gather).  A well separated
    # per-row winner avoids bf16 ties, so the tie-permissive accuracy matches
    # torch's argmax exactly.
    N3, C3 = 16, 200
    base = jax.random.normal(k5, (N3, C3), dtype=jnp.float32)
    win = jax.random.randint(k6, (N3,), 0, C3, dtype=jnp.int32)
    base = base.at[jnp.arange(N3), win].add(4.0)
    pred3 = base.astype(jnp.bfloat16)
    label3 = jax.random.randint(jax.random.PRNGKey(7), (N3,), 0, C3, dtype=jnp.int32)
    loss3, acc3 = ce_with_mask(pred3, label3)
    jax.block_until_ready((loss3, acc3))
    p3_f32 = pred3.astype(jnp.float32)
    logp3 = jax.nn.log_softmax(p3_f32, axis=-1)
    ref_loss3 = -jnp.mean(logp3[jnp.arange(N3), label3])
    ref_acc3 = jnp.sum(jnp.argmax(p3_f32, axis=1) == label3) / N3
    assert jnp.allclose(loss3, ref_loss3, atol=1e-3), (loss3, ref_loss3)
    assert jnp.allclose(acc3, ref_acc3, atol=1e-6), (acc3, ref_acc3)

    print("KERNEL_OK")
</pallas_src>

<mosaic_0001>
module attributes {stable_mosaic.version = 11 : i64} {
  func.func @_ce_with_mask_kernel(%arg0: i32, %arg1: i32, %arg2: memref<8x32xf32, #tpu.memory_space<vmem>>, %arg3: memref<8x1xi32, #tpu.memory_space<vmem>>, %arg4: memref<1x128xf32, #tpu.memory_space<vmem>>, %arg5: memref<1x128xf32, #tpu.memory_space<vmem>>) attributes {dimension_semantics = [#tpu.dimension_semantics<parallel>, #tpu.dimension_semantics<arbitrary>], iteration_bounds = array<i64: 1, 1>, scalar_prefetch = 0 : i64, scratch_operands = 0 : i64, tpu.core_type = #tpu.core_type<tc>, window_params = [{transform_indices = @transform_0, window_bounds = array<i64: 8, 32>}, {transform_indices = @transform_1, window_bounds = array<i64: 8, 1>}, {transform_indices = @transform_2, window_bounds = array<i64: 1, 128>}, {transform_indices = @transform_3, window_bounds = array<i64: 1, 128>}]} {
    %c0_i32 = arith.constant 0 : i32
    %0 = arith.cmpi eq, %arg1, %c0_i32 : i32
    %1 = arith.extui %0 : i1 to i32
    %c0_i32_0 = arith.constant 0 : i32
    %2 = arith.cmpi ne, %1, %c0_i32_0 : i32
    scf.if %2 {
      %cst_17 = arith.constant 0.000000e+00 : f32
      %41 = vector.broadcast %cst_17 : f32 to vector<1x128xf32>
      %c0_18 = arith.constant 0 : index
      %c0_19 = arith.constant 0 : index
      %42 = vector.load %arg4[%c0_18, %c0_19] : memref<1x128xf32, #tpu.memory_space<vmem>>, vector<1x128xf32>
      tpu.vector_store %arg4[%c0_18, %c0_19], %41 {strides = array<i32>} : memref<1x128xf32, #tpu.memory_space<vmem>>, vector<1x128xf32>,
      %cst_20 = arith.constant 0.000000e+00 : f32
      %43 = vector.broadcast %cst_20 : f32 to vector<1x128xf32>
      %c0_21 = arith.constant 0 : index
      %c0_22 = arith.constant 0 : index
      %44 = vector.load %arg5[%c0_21, %c0_22] : memref<1x128xf32, #tpu.memory_space<vmem>>, vector<1x128xf32>
      tpu.vector_store %arg5[%c0_21, %c0_22], %43 {strides = array<i32>} : memref<1x128xf32, #tpu.memory_space<vmem>>, vector<1x128xf32>,
    } else {
    }
    %c0 = arith.constant 0 : index
    %c0_1 = arith.constant 0 : index
    %3 = vector.load %arg2[%c0, %c0_1] : memref<8x32xf32, #tpu.memory_space<vmem>>, vector<8x32xf32>
    %c0_2 = arith.constant 0 : index
    %c0_3 = arith.constant 0 : index
    %4 = vector.load %arg3[%c0_2, %c0_3] : memref<8x1xi32, #tpu.memory_space<vmem>>, vector<8x1xi32>
    %5 = tpu.iota {dimensions = array<i32: 1>} : vector<8x32xi32>
    %6 = vector.broadcast %4 : vector<8x1xi32> to vector<8x32xi32>
    %7 = arith.cmpi eq, %5, %6 : vector<8x32xi32>
    %cst = arith.constant dense<0xFF800000> : vector<8xf32>
    %8 = vector.multi_reduction <maximumf>, %3, %cst [1] : vector<8x32xf32> to vector<8xf32>
    %9 = vector.shape_cast %8 : vector<8xf32> to vector<8x1xf32>
    %cst_4 = arith.constant 0.000000e+00 : f32
    %10 = vector.broadcast %cst_4 : f32 to vector<8x32xf32>
    %11 = arith.select %7, %3, %10 : vector<8x32xi1>, vector<8x32xf32>
    %cst_5 = arith.constant dense<0.000000e+00> : vector<8xf32>
    %12 = vector.multi_reduction <add>, %11, %cst_5 [1] : vector<8x32xf32> to vector<8xf32>
    %13 = vector.shape_cast %12 : vector<8xf32> to vector<8x1xf32>
    %14 = vector.broadcast %9 : vector<8x1xf32> to vector<8x32xf32>
    %15 = arith.subf %3, %14 : vector<8x32xf32>
    %16 = math.exp %15 : vector<8x32xf32>
    %cst_6 = arith.constant dense<0.000000e+00> : vector<8xf32>
    %17 = vector.multi_reduction <add>, %16, %cst_6 [1] : vector<8x32xf32> to vector<8xf32>
    %18 = vector.shape_cast %17 : vector<8xf32> to vector<8x1xf32>
    %19 = math.log %18 : vector<8x1xf32>
    %20 = arith.subf %13, %9 : vector<8x1xf32>
    %21 = arith.subf %19, %20 : vector<8x1xf32>
    %22 = arith.cmpf oeq, %13, %9 : vector<8x1xf32>
    %c0_7 = arith.constant 0 : index
    %c0_8 = arith.constant 0 : index
    %23 = vector.load %arg4[%c0_7, %c0_8] : memref<1x128xf32, #tpu.memory_space<vmem>>, vector<1x128xf32>
    %24 = vector.shape_cast %21 : vector<8x1xf32> to vector<1x8x1xf32>
    %cst_9 = arith.constant dense<0.000000e+00> : vector<1xf32>
    %25 = vector.multi_reduction <add>, %24, %cst_9 [1, 2] : vector<1x8x1xf32> to vector<1xf32>
    %26 = vector.shape_cast %25 : vector<1xf32> to vector<1x1x1xf32>
    %27 = vector.extract %26[0, 0, 0] : f32 from vector<1x1x1xf32>
    %28 = vector.broadcast %27 : f32 to vector<1x128xf32>
    %29 = arith.addf %23, %28 : vector<1x128xf32>
    %c0_10 = arith.constant 0 : index
    %c0_11 = arith.constant 0 : index
    %30 = vector.load %arg4[%c0_10, %c0_11] : memref<1x128xf32, #tpu.memory_space<vmem>>, vector<1x128xf32>
    tpu.vector_store %arg4[%c0_10, %c0_11], %29 {strides = array<i32>} : memref<1x128xf32, #tpu.memory_space<vmem>>, vector<1x128xf32>,
    %c0_12 = arith.constant 0 : index
    %c0_13 = arith.constant 0 : index
    %31 = vector.load %arg5[%c0_12, %c0_13] : memref<1x128xf32, #tpu.memory_space<vmem>>, vector<1x128xf32>
    %32 = arith.extui %22 : vector<8x1xi1> to vector<8x1xi32>
    %33 = arith.sitofp %32 : vector<8x1xi32> to vector<8x1xf32>
    %34 = vector.shape_cast %33 : vector<8x1xf32> to vector<1x8x1xf32>
    %cst_14 = arith.constant dense<0.000000e+00> : vector<1xf32>
    %35 = vector.multi_reduction <add>, %34, %cst_14 [1, 2] : vector<1x8x1xf32> to vector<1xf32>
    %36 = vector.shape_cast %35 : vector<1xf32> to vector<1x1x1xf32>
    %37 = vector.extract %36[0, 0, 0] : f32 from vector<1x1x1xf32>
    %38 = vector.broadcast %37 : f32 to vector<1x128xf32>
    %39 = arith.addf %31, %38 : vector<1x128xf32>
    %c0_15 = arith.constant 0 : index
    %c0_16 = arith.constant 0 : index
    %40 = vector.load %arg5[%c0_15, %c0_16] : memref<1x128xf32, #tpu.memory_space<vmem>>, vector<1x128xf32>
    tpu.vector_store %arg5[%c0_15, %c0_16], %39 {strides = array<i32>} : memref<1x128xf32, #tpu.memory_space<vmem>>, vector<1x128xf32>,
    return
  }
  func.func @transform_0(%arg0: i32, %arg1: i32) -> (i32, i32) {
    %c1_i32 = arith.constant 1 : i32
    %0 = arith.muli %arg0, %c1_i32 : i32
    %1 = arith.addi %0, %arg1 : i32
    %c0_i32 = arith.constant 0 : i32
    %2 = arith.minsi %1, %c0_i32 : i32
    %c0_i32_0 = arith.constant 0 : i32
    %c0_i32_1 = arith.constant 0 : i32
    return %2, %c0_i32_0 : i32, i32
  }
  func.func @transform_1(%arg0: i32, %arg1: i32) -> (i32, i32) {
    %c1_i32 = arith.constant 1 : i32
    %0 = arith.muli %arg0, %c1_i32 : i32
    %1 = arith.addi %0, %arg1 : i32
    %c0_i32 = arith.constant 0 : i32
    %2 = arith.minsi %1, %c0_i32 : i32
    %c0_i32_0 = arith.constant 0 : i32
    %c0_i32_1 = arith.constant 0 : i32
    return %2, %c0_i32_0 : i32, i32
  }
  func.func @transform_2(%arg0: i32, %arg1: i32) -> (i32, i32) {
    %c0_i32 = arith.constant 0 : i32
    %c0_i32_0 = arith.constant 0 : i32
    return %c0_i32, %arg0 : i32, i32
  }
  func.func @transform_3(%arg0: i32, %arg1: i32) -> (i32, i32) {
    %c0_i32 = arith.constant 0 : i32
    %c0_i32_0 = arith.constant 0 : i32
    return %c0_i32, %arg0 : i32, i32
  }
}

</mosaic_0001>

<llo_original>
// kernel: tpu_custom_call.1
$region0: #{tpu_custom_call.1}
  #allocation0 [shape = 'u32[]', space=smem, size = 0x4, offset = 0x4, fixed_abs, tag = 'smem constant byte address 0x4 - core index']
  #allocation1 [shape = 'u32[144,128]{1,0:T(1,128)}', space=vmem, size = 0x12000, scoped, tag = 'internal scratch']
  %s0 = inlined_call_operand.vmem [shape: f32[8,32], index: 0, kind: input, shape index: {}]
  %s1 = inlined_call_operand.vmem [shape: s32[8,1], index: 1, kind: input, shape index: {}]
  %s2 = inlined_call_operand.hbm [shape: f32[1,128], index: 2, kind: output, shape index: {0}]
  %s3 = inlined_call_operand.hbm [shape: f32[1,128], index: 3, kind: output, shape index: {1}]
  %4 = xla_tuple %s2, %s3
  %s5 = sld [smem:[#allocation0]]
  $region30: #{tpu_custom_call.1} parent=0
    _
  %s7 = ssub.s32 1, %s5
  %s8 = scalar_select 0, %s7, %s5
  $region1: #{tpu_custom_call.1} parent=0
    #allocation2 [shape = 'u8[512]{0}', space=vmem, size = 0x400, scoped, tag = 'output window, operand 0, single buffered']
    #allocation3 [shape = 's32[1]{0}', space=sflag, size = 0x4, scoped, tag = 'scoped memory for tpu_custom_call.1']
    #allocation4 [shape = 'u8[512]{0}', space=vmem, size = 0x400, scoped, tag = 'output window, operand 1, single buffered']
    #allocation5 [shape = 's32[1]{0}', space=sflag, size = 0x4, scoped, tag = 'scoped memory for tpu_custom_call.1']
    %9 = vsyncpa [#allocation3], 0
    %10 = vsyncpa [#allocation5], 0
    // Predicated region
    $region2: #{tpu_custom_call.1} parent=1 // pred_check
      _
    $region3: #{tpu_custom_call.1} parent=1 // pred_check_branch
      %12 = sbr.rel (0) target = $region5
    $region4: #{tpu_custom_call.1} parent=1 // pred_region
      %s13 = sadd.s32 0, 0
      %p14 = scmp.lt.s32.totalorder %s13, 0
      %s15 = scalar_select %p14, %s13, 0
      %p16 = scmp.lt.s32.totalorder %s15, 0
      %s17 = scalar_select %p16, %s15, 0
      %s18 = smul.addr %s17, 8
      %s19 = scalar_lea.vmem %s0, %s18
      %s20 = sadd.s32 0, 0
      %p21 = scmp.lt.s32.totalorder %s20, 0
      %s22 = scalar_select %p21, %s20, 0
    $region5: #{tpu_custom_call.1} parent=1 // pred_fallthru
      _
    // Predicated region
    $region6: #{tpu_custom_call.1} parent=1 // pred_check
      _
    $region7: #{tpu_custom_call.1} parent=1 // pred_check_branch
      %24 = sbr.rel (0) target = $region9
    $region8: #{tpu_custom_call.1} parent=1 // pred_region
      %s25 = sadd.s32 0, 0
      %p26 = scmp.lt.s32.totalorder %s25, 0
      %s27 = scalar_select %p26, %s25, 0
      %p28 = scmp.lt.s32.totalorder %s27, 0
      %s29 = scalar_select %p28, %s27, 0
      %s30 = smul.addr %s29, 8
      %s31 = scalar_lea.vmem %s1, %s30
      %s32 = sadd.s32 0, 0
      %p33 = scmp.lt.s32.totalorder %s32, 0
      %s34 = scalar_select %p33, %s32, 0
    $region9: #{tpu_custom_call.1} parent=1 // pred_fallthru
      _
    %s35 = sadd.s32 0, 0
    %p36 = scmp.lt.s32.totalorder %s35, 0
    %s37 = scalar_select %p36, %s35, 0
    %p38 = scmp.lt.s32.totalorder %s37, 0
    %s39 = scalar_select %p38, %s37, 0
    %s40 = smul.addr %s39, 8
    %s41 = scalar_lea.vmem %s0, %s40
    %s42 = sadd.s32 0, 0
    %p43 = scmp.lt.s32.totalorder %s42, 0
    %s44 = scalar_select %p43, %s42, 0
    %p45 = scmp.lt.s32.totalorder %s44, 0
    %s46 = scalar_select %p45, %s44, 0
    %s47 = smul.addr %s46, 8
    %s48 = scalar_lea.vmem %s1, %s47
    %s49 = sadd.s32 0, 0
    %p50 = scmp.lt.s32.totalorder %s49, 0
    %s51 = scalar_select %p50, %s49, 0
    %p52 = scmp.lt.s32.totalorder %s51, 0
    %s53 = scalar_select %p52, %s51, 0
    %s54 = smul.addr %s53, 8
    %s55 = scalar_lea.vmem %s0, %s54
    %s56 = sadd.s32 0, 0
    %p57 = scmp.lt.s32.totalorder %s56, 0
    %s58 = scalar_select %p57, %s56, 0
    %s59 = sadd.s32 0, 0
    %p60 = scmp.lt.s32.totalorder %s59, 0
    %s61 = scalar_select %p60, %s59, 0
    %p62 = scmp.lt.s32.totalorder %s61, 0
    %s63 = scalar_select %p62, %s61, 0
    %s64 = smul.addr %s63, 8
    %s65 = scalar_lea.vmem %s1, %s64
    %s66 = sadd.s32 0, 0
    %p67 = scmp.lt.s32.totalorder %s66, 0
    %s68 = scalar_select %p67, %s66, 0
    %p69 = scmp.eq.s32.totalorder 0, 0
    // Predicated region
    $region10: #{tpu_custom_call.1} parent=1 // pred_check
      %p70 = pneg %p69
    $region11: #{tpu_custom_call.1} parent=1 // pred_check_branch
      %72 = sbr.rel (%p70) target = $region13
    $region12: #{tpu_custom_call.1} parent=1 // pred_region
      %73 = vst [vmem:[#allocation2] sm:$0x1] 0.0
      %74 = vst [vmem:[#allocation4] sm:$0x1] 0.0
    $region13: #{tpu_custom_call.1} parent=1 // pred_fallthru
      _
    %v75 = vld [vmem:[%s55] sm:$0xff]
    %v76 = vld [vmem:[%s65] sm:$0xff]
    %v77 = vlaneseq
    %v78 = vand.u32 %v77, 127
    %79 = vset.pattern.permute.xlu0 0
    %80 = vperm.xlu0 %79, %v76
    %v81 = vpop.permute.xlu0 %80
    %vm82 = vcmp.eq.s32.totalorder %v78, %v81
    %vm83 = vcmask 261120
    %v84 = vsel %vm83, %v75, -inf
    %85 = vmax.xlane.f32.xlu0 %v84
    %v86 = vpop.xlane.xlu0 %85
    %v87 = vsel %vm82, %v75, 0.0
    %v88 = vsel %vm83, %v87, 0.0
    %89 = vadd.xlane.f32.xlu0 %v88
    %v90 = vpop.xlane.xlu0 %89
    %v91 = vsub.f32 %v75, %v86
    %v92 = vmul.f32 %v91, 1.442695
    %v93 = vpow.pop %v92
    %v94 = vsel %vm83, %v93, 0.0
    %95 = vadd.xlane.f32.xlu0 %v94
    %v96 = vpop.xlane.xlu0 %95
    %v97 = vlog2.pop %v96
    %v98 = vmul.f32 %v97, 0.6931472
    %v99 = vsub.f32 %v90, %v86
    %v100 = vsub.f32 %v98, %v99
    %vm101 = vcmp.eq.f32.partialorder %v90, %v86
    %v102 = vld [vmem:[#allocation2] sm:$0x1]
    %vm103 = vcmask 7168
    %v104 = vsel %vm103, %v100, 0.0
    %105 = vadd.xlane.f32.xlu0 %v104
    %v106 = vpop.xlane.xlu0 %105
    %v107 = vrot.slane %v106, 4
    %v108 = vadd.f32 %v106, %v107
    %v109 = vrot.slane %v108, 2
    %v110 = vadd.f32 %v108, %v109
    %v111 = vrot.slane %v110, 1
    %v112 = vadd.f32 %v110, %v111
    %s113 = vtos %v112
    %v114 = vstv %s113
    %v115 = vadd.f32 %v102, %v114
    %116 = vst [vmem:[#allocation2] sm:$0x1] %v115
    %v117 = vld [vmem:[#allocation4] sm:$0x1]
    %v118 = vsel %vm101, 1, 0
    %v119 = vcvt.s32.f32 %v118
    %v120 = vsel %vm103, %v119, 0.0
    %121 = vadd.xlane.f32.xlu0 %v120
    %v122 = vpop.xlane.xlu0 %121
    %v123 = vrot.slane %v122, 4
    %v124 = vadd.f32 %v122, %v123
    %v125 = vrot.slane %v124, 2
    %v126 = vadd.f32 %v124, %v125
    %v127 = vrot.slane %v126, 1
    %v128 = vadd.f32 %v126, %v127
    %s129 = vtos %v128
    %v130 = vstv %s129
    %v131 = vadd.f32 %v117, %v130
    %132 = vst [vmem:[#allocation4] sm:$0x1] %v131
    // Predicated region
    $region14: #{tpu_custom_call.1} parent=1 // pred_check
      _
    $region15: #{tpu_custom_call.1} parent=1 // pred_check_branch
      %134 = sbr.rel (0) target = $region17
    $region16: #{tpu_custom_call.1} parent=1 // pred_region
      %s136 = ssub.s32 16, 16
      %137 = vsyncadd [#allocation3], %s136
      %s139 = sshll.u32 [#allocation2], 4
      %s140 = int_to_ptr.vmem [resolvable:$true] %s139
      %142 = dma.vmem_to_hbm [thread:$0]  %s140, 16, %s2, [#allocation3]
    $region17: #{tpu_custom_call.1} parent=1 // pred_fallthru
      _
    // Predicated region
    $region18: #{tpu_custom_call.1} parent=1 // pred_check
      _
    $region19: #{tpu_custom_call.1} parent=1 // pred_check_branch
      %144 = sbr.rel (0) target = $region21
    $region20: #{tpu_custom_call.1} parent=1 // pred_region
      %s146 = ssub.s32 16, 16
      %147 = vsyncadd [#allocation5], %s146
      %s149 = sshll.u32 [#allocation4], 4
      %s150 = int_to_ptr.vmem [resolvable:$true] %s149
      %152 = dma.vmem_to_hbm [thread:$0]  %s150, 16, %s3, [#allocation5]
    $region21: #{tpu_custom_call.1} parent=1 // pred_fallthru
      _
    // Predicated region
    $region22: #{tpu_custom_call.1} parent=1 // pred_check
      _
    $region23: #{tpu_custom_call.1} parent=1 // pred_check_branch
      %154 = sbr.rel (0) target = $region25
    $region24: #{tpu_custom_call.1} parent=1 // pred_region
      %155 = dma.done [#allocation3], 16
    $region25: #{tpu_custom_call.1} parent=1 // pred_fallthru
      _
    // Predicated region
    $region26: #{tpu_custom_call.1} parent=1 // pred_check
      _
    $region27: #{tpu_custom_call.1} parent=1 // pred_check_branch
      %157 = sbr.rel (0) target = $region29
    $region28: #{tpu_custom_call.1} parent=1 // pred_region
      %158 = dma.done [#allocation5], 16
    $region29: #{tpu_custom_call.1} parent=1 // pred_fallthru
      _
    %159 = vsyncpa [#allocation3], 1
    %160 = vsyncpa [#allocation5], 1

</llo_original>
